<compile_context>
chip_gen: v7x
topology: tpu7x:2x2x1
jax: 0.10.0
libtpu: 0.0.40
codegen_flags: <defaults>
</compile_context>

<pallas_src>
import jax
import jax.numpy as jnp
from jax.experimental import pallas as pl
from jax.experimental.pallas import tpu as pltpu


def ncf_kernel(
    x_ref,                      # [4D, TB] packed [gmf_u; gmf_i; mlp_u; mlp_i] (transposed)
    w1_ref, b1_ref,             # [32, 2D], [32, 1]   (Linear(2D -> 32), torch [out, in])
    w2_ref, b2_ref,             # [16, 32], [16, 1]   (Linear(32 -> 16))
    w3g_ref, w3m_ref, b3_ref,   # [1, D], [1, 16], [1, 1]  (Linear(D+16 -> 1), split)
    out_ref,                    # [1, TB]  lane-dense output row
):
    D = w3g_ref.shape[1]

    # GMF branch: elementwise product of the two embedding slabs (VPU).
    gmf = x_ref[0:D, :] * x_ref[D:2 * D, :]                       # [D, TB]

    # MLP branch: concat([mlp_u, mlp_i]) is just rows 2D:4D of the packed input.
    mlp_in = x_ref[2 * D:4 * D, :]                                # [2D, TB]

    h1 = jnp.dot(w1_ref[...], mlp_in,
                 preferred_element_type=jnp.float32) + b1_ref[...]
    h1 = jnp.maximum(h1, 0.0)                                     # [32, TB]

    h2 = jnp.dot(w2_ref[...], h1,
                 preferred_element_type=jnp.float32) + b2_ref[...]
    h2 = jnp.maximum(h2, 0.0)                                     # [16, TB]

    # Output layer: cat([gmf, h2]) @ W3.T == W3g @ gmf + W3m @ h2  (transposed)
    out = (jnp.dot(w3g_ref[...], gmf, preferred_element_type=jnp.float32)
           + jnp.dot(w3m_ref[...], h2, preferred_element_type=jnp.float32)
           + b3_ref[...])                                          # [1, TB]
    out_ref[...] = out


def init_params(key, num_users, num_items, embedding_dim=8):
    ks = jax.random.split(key, 8)
    D = embedding_dim

    def linear_init(k, fan_in, fan_out):
        # torch.nn.Linear default: U(-1/sqrt(fan_in), 1/sqrt(fan_in)),
        # weight stored torch-style [out, in].
        kw, kb = jax.random.split(k)
        bound = 1.0 / (fan_in ** 0.5)
        w = jax.random.uniform(kw, (fan_out, fan_in), jnp.float32, -bound, bound)
        b = jax.random.uniform(kb, (fan_out,), jnp.float32, -bound, bound)
        return w, b

    params = {}
    # nn.Embedding default init: N(0, 1)
    params["gmf_user_emb"] = jax.random.normal(ks[0], (num_users, D), jnp.float32)
    params["gmf_item_emb"] = jax.random.normal(ks[1], (num_items, D), jnp.float32)
    params["mlp_user_emb"] = jax.random.normal(ks[2], (num_users, D), jnp.float32)
    params["mlp_item_emb"] = jax.random.normal(ks[3], (num_items, D), jnp.float32)
    params["w1"], params["b1"] = linear_init(ks[4], 2 * D, 32)
    params["w2"], params["b2"] = linear_init(ks[5], 32, 16)
    params["w3"], params["b3"] = linear_init(ks[6], 16 + D, 1)
    return params


def ncf_forward_pallas(user_id, item_id, params, embedding_dim=8, tile_b=4096):
    # tile_b=4096: packed input block is 4D*TB*4 B = 512 KiB (double-buffered
    # -> 1 MiB), comfortably inside the scoped-VMEM default on v5e/v6e/v7x.
    D = embedding_dim
    B = user_id.shape[0]

    # Pad batch to a lane-aligned multiple of the tile (tail handled by
    # padding, not in-kernel masking). Index 0 is a valid (discarded) pad row.
    B_lane = pl.cdiv(B, 128) * 128
    TB = min(tile_b, B_lane)
    B_pad = pl.cdiv(B_lane, TB) * TB
    pad = B_pad - B
    uid = jnp.pad(user_id, (0, pad))
    iid = jnp.pad(item_id, (0, pad))

    # Embedding lookups (glue) packed into one lane-dense operand, transposed
    # so the batch lives in lanes: [4D, B_pad].
    x = jnp.concatenate(
        [params["gmf_user_emb"][uid], params["gmf_item_emb"][iid],
         params["mlp_user_emb"][uid], params["mlp_item_emb"][iid]],
        axis=-1).T

    # Weights in torch [out, in] layout; biases as column vectors (broadcast
    # along lanes in-kernel). W3 split so the final concat is a split matmul.
    w1 = params["w1"]
    b1 = params["b1"].reshape(-1, 1)
    w2 = params["w2"]
    b2 = params["b2"].reshape(-1, 1)
    w3g = params["w3"][:, :D]
    w3m = params["w3"][:, D:]
    b3 = params["b3"].reshape(1, 1)

    num_blocks = B_pad // TB

    out_t = pl.pallas_call(
        ncf_kernel,
        out_shape=jax.ShapeDtypeStruct((1, B_pad), jnp.float32),
        grid=(num_blocks,),
        in_specs=[
            pl.BlockSpec((4 * D, TB), lambda i: (0, i)),   # packed embeddings
            pl.BlockSpec(w1.shape, lambda i: (0, 0)),      # weights stay resident
            pl.BlockSpec(b1.shape, lambda i: (0, 0)),
            pl.BlockSpec(w2.shape, lambda i: (0, 0)),
            pl.BlockSpec(b2.shape, lambda i: (0, 0)),
            pl.BlockSpec(w3g.shape, lambda i: (0, 0)),
            pl.BlockSpec(w3m.shape, lambda i: (0, 0)),
            pl.BlockSpec(b3.shape, lambda i: (0, 0)),
        ],
        out_specs=pl.BlockSpec((1, TB), lambda i: (0, i)),  # lane-dense output
        compiler_params=pltpu.CompilerParams(
            dimension_semantics=("parallel",)),
    )(x, w1, b1, w2, b2, w3g, w3m, b3)

    return out_t[0, :B].reshape(B, 1)


def ncf_forward_ref(user_id, item_id, params):
    # Pure-JAX reference mirroring the PyTorch forward exactly.
    gmf_u = params["gmf_user_emb"][user_id]
    gmf_i = params["gmf_item_emb"][item_id]
    gmf_out = gmf_u * gmf_i
    mlp_u = params["mlp_user_emb"][user_id]
    mlp_i = params["mlp_item_emb"][item_id]
    mlp_in = jnp.concatenate([mlp_u, mlp_i], axis=-1)
    h1 = jnp.maximum(mlp_in @ params["w1"].T + params["b1"], 0.0)
    h2 = jnp.maximum(h1 @ params["w2"].T + params["b2"], 0.0)
    feat = jnp.concatenate([gmf_out, h2], axis=-1)
    return feat @ params["w3"].T + params["b3"]


if __name__ == "__main__":
    num_users, num_items, embedding_dim = 100, 200, 8
    batch = 8

    key = jax.random.PRNGKey(0)
    kp, ku, ki = jax.random.split(key, 3)
    params = init_params(kp, num_users, num_items, embedding_dim)

    user_id = jax.random.randint(ku, (batch,), 0, num_users, dtype=jnp.int32)
    item_id = jax.random.randint(ki, (batch,), 0, num_items, dtype=jnp.int32)

    out = ncf_forward_pallas(user_id, item_id, params, embedding_dim)
    out = jax.block_until_ready(out)

    ref = ncf_forward_ref(user_id, item_id, params)
    assert out.shape == (batch, 1), out.shape
    assert jnp.allclose(out, ref, atol=1e-4, rtol=1e-4), (out, ref)

    print("KERNEL_OK")
</pallas_src>

<mosaic_0001>
module attributes {stable_mosaic.version = 11 : i64} {
  func.func @ncf_kernel(%arg0: i32, %arg1: memref<32x128xf32, #tpu.memory_space<vmem>>, %arg2: memref<32x16xf32, #tpu.memory_space<vmem>>, %arg3: memref<32x1xf32, #tpu.memory_space<vmem>>, %arg4: memref<16x32xf32, #tpu.memory_space<vmem>>, %arg5: memref<16x1xf32, #tpu.memory_space<vmem>>, %arg6: memref<1x8xf32, #tpu.memory_space<vmem>>, %arg7: memref<1x16xf32, #tpu.memory_space<vmem>>, %arg8: memref<1x1xf32, #tpu.memory_space<vmem>>, %arg9: memref<1x128xf32, #tpu.memory_space<vmem>>) attributes {dimension_semantics = [#tpu.dimension_semantics<parallel>], iteration_bounds = array<i64: 1>, scalar_prefetch = 0 : i64, scratch_operands = 0 : i64, tpu.core_type = #tpu.core_type<tc>, window_params = [{transform_indices = @transform_0, window_bounds = array<i64: 32, 128>}, {pipeline_mode = #tpu.pipeline_mode<synchronous>, transform_indices = @transform_1, window_bounds = array<i64: 32, 16>}, {pipeline_mode = #tpu.pipeline_mode<synchronous>, transform_indices = @transform_2, window_bounds = array<i64: 32, 1>}, {pipeline_mode = #tpu.pipeline_mode<synchronous>, transform_indices = @transform_3, window_bounds = array<i64: 16, 32>}, {pipeline_mode = #tpu.pipeline_mode<synchronous>, transform_indices = @transform_4, window_bounds = array<i64: 16, 1>}, {pipeline_mode = #tpu.pipeline_mode<synchronous>, transform_indices = @transform_5, window_bounds = array<i64: 1, 8>}, {pipeline_mode = #tpu.pipeline_mode<synchronous>, transform_indices = @transform_6, window_bounds = array<i64: 1, 16>}, {pipeline_mode = #tpu.pipeline_mode<synchronous>, transform_indices = @transform_7, window_bounds = array<i64: 1, 1>}, {transform_indices = @transform_8, window_bounds = array<i64: 1, 128>}]} {
    %c0 = arith.constant 0 : index
    %c0_0 = arith.constant 0 : index
    %0 = vector.load %arg1[%c0, %c0_0] : memref<32x128xf32, #tpu.memory_space<vmem>>, vector<8x128xf32>
    %c8 = arith.constant 8 : index
    %c0_1 = arith.constant 0 : index
    %1 = vector.load %arg1[%c8, %c0_1] : memref<32x128xf32, #tpu.memory_space<vmem>>, vector<8x128xf32>
    %2 = arith.mulf %0, %1 : vector<8x128xf32>
    %c16 = arith.constant 16 : index
    %c0_2 = arith.constant 0 : index
    %3 = vector.load %arg1[%c16, %c0_2] : memref<32x128xf32, #tpu.memory_space<vmem>>, vector<16x128xf32>
    %c0_3 = arith.constant 0 : index
    %c0_4 = arith.constant 0 : index
    %4 = vector.load %arg2[%c0_3, %c0_4] : memref<32x16xf32, #tpu.memory_space<vmem>>, vector<32x16xf32>
    %cst = arith.constant dense<0.000000e+00> : vector<32x128xf32>
    %5 = tpu.matmul %4, %3, %cst {dimension_numbers = #tpu.dot_dimension_numbers<[1], [0], [0], [1], [0, 0, 1, 1], [], []>} : vector<32x16xf32>, vector<16x128xf32>, vector<32x128xf32> -> vector<32x128xf32>
    %c0_5 = arith.constant 0 : index
    %c0_6 = arith.constant 0 : index
    %6 = vector.load %arg3[%c0_5, %c0_6] : memref<32x1xf32, #tpu.memory_space<vmem>>, vector<32x1xf32>
    %7 = vector.broadcast %6 : vector<32x1xf32> to vector<32x128xf32>
    %8 = arith.addf %5, %7 : vector<32x128xf32>
    %cst_7 = arith.constant 0.000000e+00 : f32
    %9 = vector.broadcast %cst_7 : f32 to vector<32x128xf32>
    %10 = arith.maximumf %8, %9 : vector<32x128xf32>
    %c0_8 = arith.constant 0 : index
    %c0_9 = arith.constant 0 : index
    %11 = vector.load %arg4[%c0_8, %c0_9] : memref<16x32xf32, #tpu.memory_space<vmem>>, vector<16x32xf32>
    %cst_10 = arith.constant dense<0.000000e+00> : vector<16x128xf32>
    %12 = tpu.matmul %11, %10, %cst_10 {dimension_numbers = #tpu.dot_dimension_numbers<[1], [0], [0], [1], [0, 0, 1, 1], [], []>} : vector<16x32xf32>, vector<32x128xf32>, vector<16x128xf32> -> vector<16x128xf32>
    %c0_11 = arith.constant 0 : index
    %c0_12 = arith.constant 0 : index
    %13 = vector.load %arg5[%c0_11, %c0_12] : memref<16x1xf32, #tpu.memory_space<vmem>>, vector<16x1xf32>
    %14 = vector.broadcast %13 : vector<16x1xf32> to vector<16x128xf32>
    %15 = arith.addf %12, %14 : vector<16x128xf32>
    %cst_13 = arith.constant 0.000000e+00 : f32
    %16 = vector.broadcast %cst_13 : f32 to vector<16x128xf32>
    %17 = arith.maximumf %15, %16 : vector<16x128xf32>
    %c0_14 = arith.constant 0 : index
    %c0_15 = arith.constant 0 : index
    %18 = vector.load %arg6[%c0_14, %c0_15] : memref<1x8xf32, #tpu.memory_space<vmem>>, vector<1x8xf32>
    %cst_16 = arith.constant dense<0.000000e+00> : vector<1x128xf32>
    %19 = tpu.matmul %18, %2, %cst_16 {dimension_numbers = #tpu.dot_dimension_numbers<[1], [0], [0], [1], [0, 0, 1, 1], [], []>} : vector<1x8xf32>, vector<8x128xf32>, vector<1x128xf32> -> vector<1x128xf32>
    %c0_17 = arith.constant 0 : index
    %c0_18 = arith.constant 0 : index
    %20 = vector.load %arg7[%c0_17, %c0_18] : memref<1x16xf32, #tpu.memory_space<vmem>>, vector<1x16xf32>
    %cst_19 = arith.constant dense<0.000000e+00> : vector<1x128xf32>
    %21 = tpu.matmul %20, %17, %cst_19 {dimension_numbers = #tpu.dot_dimension_numbers<[1], [0], [0], [1], [0, 0, 1, 1], [], []>} : vector<1x16xf32>, vector<16x128xf32>, vector<1x128xf32> -> vector<1x128xf32>
    %22 = arith.addf %19, %21 : vector<1x128xf32>
    %c0_20 = arith.constant 0 : index
    %c0_21 = arith.constant 0 : index
    %23 = vector.load %arg8[%c0_20, %c0_21] : memref<1x1xf32, #tpu.memory_space<vmem>>, vector<1x1xf32>
    %24 = vector.broadcast %23 : vector<1x1xf32> to vector<1x128xf32>
    %25 = arith.addf %22, %24 : vector<1x128xf32>
    %c0_22 = arith.constant 0 : index
    %c0_23 = arith.constant 0 : index
    %26 = vector.load %arg9[%c0_22, %c0_23] : memref<1x128xf32, #tpu.memory_space<vmem>>, vector<1x128xf32>
    tpu.vector_store %arg9[%c0_22, %c0_23], %25 {strides = array<i32>} : memref<1x128xf32, #tpu.memory_space<vmem>>, vector<1x128xf32>,
    return
  }
  func.func @transform_0(%arg0: i32) -> (i32, i32) {
    %c0_i32 = arith.constant 0 : i32
    %c0_i32_0 = arith.constant 0 : i32
    return %c0_i32, %arg0 : i32, i32
  }
  func.func @transform_1(%arg0: i32) -> (i32, i32) {
    %c0_i32 = arith.constant 0 : i32
    %c0_i32_0 = arith.constant 0 : i32
    %c0_i32_1 = arith.constant 0 : i32
    return %c0_i32, %c0_i32_0 : i32, i32
  }
  func.func @transform_2(%arg0: i32) -> (i32, i32) {
    %c0_i32 = arith.constant 0 : i32
    %c0_i32_0 = arith.constant 0 : i32
    %c0_i32_1 = arith.constant 0 : i32
    return %c0_i32, %c0_i32_0 : i32, i32
  }
  func.func @transform_3(%arg0: i32) -> (i32, i32) {
    %c0_i32 = arith.constant 0 : i32
    %c0_i32_0 = arith.constant 0 : i32
    %c0_i32_1 = arith.constant 0 : i32
    return %c0_i32, %c0_i32_0 : i32, i32
  }
  func.func @transform_4(%arg0: i32) -> (i32, i32) {
    %c0_i32 = arith.constant 0 : i32
    %c0_i32_0 = arith.constant 0 : i32
    %c0_i32_1 = arith.constant 0 : i32
    return %c0_i32, %c0_i32_0 : i32, i32
  }
  func.func @transform_5(%arg0: i32) -> (i32, i32) {
    %c0_i32 = arith.constant 0 : i32
    %c0_i32_0 = arith.constant 0 : i32
    %c0_i32_1 = arith.constant 0 : i32
    return %c0_i32, %c0_i32_0 : i32, i32
  }
  func.func @transform_6(%arg0: i32) -> (i32, i32) {
    %c0_i32 = arith.constant 0 : i32
    %c0_i32_0 = arith.constant 0 : i32
    %c0_i32_1 = arith.constant 0 : i32
    return %c0_i32, %c0_i32_0 : i32, i32
  }
  func.func @transform_7(%arg0: i32) -> (i32, i32) {
    %c0_i32 = arith.constant 0 : i32
    %c0_i32_0 = arith.constant 0 : i32
    %c0_i32_1 = arith.constant 0 : i32
    return %c0_i32, %c0_i32_0 : i32, i32
  }
  func.func @transform_8(%arg0: i32) -> (i32, i32) {
    %c0_i32 = arith.constant 0 : i32
    %c0_i32_0 = arith.constant 0 : i32
    return %c0_i32, %arg0 : i32, i32
  }
}

</mosaic_0001>

<llo_original>
// kernel: tpu_custom_call.1
$region0: #{tpu_custom_call.1}
  #allocation0 [shape = 'u32[]', space=smem, size = 0x4, offset = 0x4, fixed_abs, tag = 'smem constant byte address 0x4 - core index']
  #allocation1 [shape = 'u32[144,128]{1,0:T(1,128)}', space=vmem, size = 0x12000, scoped, tag = 'internal scratch']
  #allocation2 [shape = 'f32[1,1]{1,0:T(1,128)S(1)}', space=vmem, size = 0x200, scoped, tag = 'scoped memory for tpu_custom_call.1']
  %s0 = inlined_call_operand.vmem [shape: f32[32,128], index: 0, kind: input, shape index: {}]
  %s1 = inlined_call_operand.vmem [shape: f32[32,16], index: 1, kind: input, shape index: {}]
  %s2 = inlined_call_operand.vmem [shape: f32[32,1], index: 2, kind: input, shape index: {}]
  %s3 = inlined_call_operand.vmem [shape: f32[16,32], index: 3, kind: input, shape index: {}]
  %s4 = inlined_call_operand.vmem [shape: f32[16,1], index: 4, kind: input, shape index: {}]
  %s5 = inlined_call_operand.vmem [shape: f32[1,8], index: 5, kind: input, shape index: {}]
  %s6 = inlined_call_operand.vmem [shape: f32[1,16], index: 6, kind: input, shape index: {}]
  %s7 = inlined_call_operand.<no memory space> [shape: f32[1,1], index: 7, kind: input, shape index: {}]
  %s8 = inlined_call_operand.hbm [shape: f32[1,128], index: 8, kind: output, shape index: {}]
  %s9 = sld [smem:[#allocation0]]
  $region42: #{tpu_custom_call.1} parent=0
    _
  %s11 = ssub.s32 1, %s9
  %s12 = scalar_select 0, %s11, %s9
  %v13 = vstv %s7
  %14 = vst [vmem:[#allocation2] sm:$0x1] %v13
  $region1: #{tpu_custom_call.1} parent=0
    #allocation3 [shape = 'u8[512]{0}', space=vmem, size = 0x400, scoped, tag = 'output window, operand 0, single buffered']
    #allocation4 [shape = 's32[1]{0}', space=sflag, size = 0x4, scoped, tag = 'scoped memory for tpu_custom_call.1']
    %15 = vsyncpa [#allocation4], 0
    // Predicated region
    $region2: #{tpu_custom_call.1} parent=1 // pred_check
      _
    $region3: #{tpu_custom_call.1} parent=1 // pred_check_branch
      %17 = sbr.rel (0) target = $region5
    $region4: #{tpu_custom_call.1} parent=1 // pred_region
      _
    $region5: #{tpu_custom_call.1} parent=1 // pred_fallthru
      _
    // Predicated region
    $region6: #{tpu_custom_call.1} parent=1 // pred_check
      _
    $region7: #{tpu_custom_call.1} parent=1 // pred_check_branch
      %19 = sbr.rel (0) target = $region9
    $region8: #{tpu_custom_call.1} parent=1 // pred_region
      _
    $region9: #{tpu_custom_call.1} parent=1 // pred_fallthru
      _
    // Predicated region
    $region10: #{tpu_custom_call.1} parent=1 // pred_check
      _
    $region11: #{tpu_custom_call.1} parent=1 // pred_check_branch
      %21 = sbr.rel (0) target = $region13
    $region12: #{tpu_custom_call.1} parent=1 // pred_region
      _
    $region13: #{tpu_custom_call.1} parent=1 // pred_fallthru
      _
    // Predicated region
    $region14: #{tpu_custom_call.1} parent=1 // pred_check
      _
    $region15: #{tpu_custom_call.1} parent=1 // pred_check_branch
      %23 = sbr.rel (0) target = $region17
    $region16: #{tpu_custom_call.1} parent=1 // pred_region
      _
    $region17: #{tpu_custom_call.1} parent=1 // pred_fallthru
      _
    // Predicated region
    $region18: #{tpu_custom_call.1} parent=1 // pred_check
      _
    $region19: #{tpu_custom_call.1} parent=1 // pred_check_branch
      %25 = sbr.rel (0) target = $region21
    $region20: #{tpu_custom_call.1} parent=1 // pred_region
      _
    $region21: #{tpu_custom_call.1} parent=1 // pred_fallthru
      _
    // Predicated region
    $region22: #{tpu_custom_call.1} parent=1 // pred_check
      _
    $region23: #{tpu_custom_call.1} parent=1 // pred_check_branch
      %27 = sbr.rel (0) target = $region25
    $region24: #{tpu_custom_call.1} parent=1 // pred_region
      _
    $region25: #{tpu_custom_call.1} parent=1 // pred_fallthru
      _
    // Predicated region
    $region26: #{tpu_custom_call.1} parent=1 // pred_check
      _
    $region27: #{tpu_custom_call.1} parent=1 // pred_check_branch
      %29 = sbr.rel (0) target = $region29
    $region28: #{tpu_custom_call.1} parent=1 // pred_region
      _
    $region29: #{tpu_custom_call.1} parent=1 // pred_fallthru
      _
    // Predicated region
    $region30: #{tpu_custom_call.1} parent=1 // pred_check
      _
    $region31: #{tpu_custom_call.1} parent=1 // pred_check_branch
      %31 = sbr.rel (0) target = $region33
    $region32: #{tpu_custom_call.1} parent=1 // pred_region
      _
    $region33: #{tpu_custom_call.1} parent=1 // pred_fallthru
      _
    %v32 = vld [vmem:[%s0] sm:$0xff]
    %v33 = vld [vmem:[%s0 + $0x8] sm:$0xff]
    %v34 = vmul.f32 %v32, %v33
    %v35 = vld [vmem:[%s0 + $0x10] sm:$0xff]
    %v36 = vld [vmem:[%s0 + $0x18] sm:$0xff]
    %v37 = vld [vmem:[%s1] sm:$0xff]
    %v38 = vld [vmem:[%s1 + $0x8] sm:$0xff]
    %v39 = vld [vmem:[%s1 + $0x10] sm:$0xff]
    %v40 = vld [vmem:[%s1 + $0x18] sm:$0xff]
    %v41 = vld [vmem:[%s2] sm:$0xff]
    %v42 = vld [vmem:[%s2 + $0x8] sm:$0xff]
    %v43 = vld [vmem:[%s2 + $0x10] sm:$0xff]
    %v44 = vld [vmem:[%s2 + $0x18] sm:$0xff]
    %46 = vset.pattern.permute.xlu0 0
    %47 = vperm.xlu0 %46, %v41
    %v48 = vpop.permute.xlu0 %47
    %51 = vset.pattern.permute.xlu0 0
    %52 = vperm.xlu0 %51, %v42
    %v53 = vpop.permute.xlu0 %52
    %56 = vset.pattern.permute.xlu0 0
    %57 = vperm.xlu0 %56, %v43
    %v58 = vpop.permute.xlu0 %57
    %61 = vset.pattern.permute.xlu0 0
    %62 = vperm.xlu0 %61, %v44
    %v63 = vpop.permute.xlu0 %62
    %vm65 = vcmask 130048
    %v67 = vsel %vm65, %v37, 0
    %v70 = vsel %vm65, %v38, 0
    %v73 = vsel %vm65, %v39, 0
    %v76 = vsel %vm65, %v40, 0
    %78 = vmatprep.subr.mxu0 0.0
    %79 = vmatpush1.msra.mxu0 %v35
    %80 = vmatprep.subr.mxu0 0.0
    %81 = vmatpush1.msra.mxu0 %v36
    %82 = vmatprep.subr.mxu0 0.0
    %83 = vmatpush1.msra.mxu0 0.0
    %84 = vmatprep.subr.mxu0 0.0
    %85 = vmatpush1.msra.mxu0 0.0
    %86 = vmatprep.subr.mxu0 0.0
    %87 = vmatpush1.msra.mxu0 0.0
    %88 = vmatprep.subr.mxu0 0.0
    %89 = vmatpush1.msra.mxu0 0.0
    %90 = vmatprep.subr.mxu0 0.0
    %91 = vmatpush1.msra.mxu0 0.0
    %92 = vmatprep.subr.mxu0 0.0
    %93 = vmatpush1.msra.mxu0 0.0
    %94 = vmatprep.subr.mxu0 0.0
    %95 = vmatpush1.msra.mxu0 0.0
    %96 = vmatprep.subr.mxu0 0.0
    %97 = vmatpush1.msra.mxu0 0.0
    %98 = vmatprep.subr.mxu0 0.0
    %99 = vmatpush1.msra.mxu0 0.0
    %100 = vmatprep.subr.mxu0 0.0
    %101 = vmatpush1.msra.mxu0 0.0
    %102 = vmatprep.subr.mxu0 0.0
    %103 = vmatpush1.msra.mxu0 0.0
    %104 = vmatprep.subr.mxu0 0.0
    %105 = vmatpush1.msra.mxu0 0.0
    %106 = vmatprep.subr.mxu0 0.0
    %107 = vmatpush1.msra.mxu0 0.0
    %108 = vmatprep.subr.mxu0 0.0
    %109 = vmatpush1.msra.mxu0 0.0
    %110 = vmatprep.subr.mxu0 0.0
    %111 = vmatpush1.msra.mxu0 0.0
    %112 = vmatprep.subr.mxu0 0.0
    %113 = vmatpush1.msra.mxu0 0.0
    %114 = vmatprep.subr.mxu0 0.0
    %115 = vmatpush1.msra.mxu0 0.0
    %116 = vmatprep.subr.mxu0 0.0
    %117 = vmatpush1.msra.mxu0 0.0
    %118 = vmatprep.subr.mxu0 0.0
    %119 = vmatpush1.msra.mxu0 0.0
    %120 = vmatprep.subr.mxu0 0.0
    %121 = vmatpush1.msra.mxu0 0.0
    %122 = vmatprep.subr.mxu0 0.0
    %123 = vmatpush1.msra.mxu0 0.0
    %124 = vmatprep.subr.mxu0 0.0
    %125 = vmatpush1.msra.mxu0 0.0
    %126 = vmatprep.subr.mxu0 0.0
    %127 = vmatpush1.msra.mxu0 0.0
    %128 = vmatprep.subr.mxu0 0.0
    %129 = vmatpush1.msra.mxu0 0.0
    %130 = vmatprep.subr.mxu0 0.0
    %131 = vmatpush1.msra.mxu0 0.0
    %132 = vmatprep.subr.mxu0 0.0
    %133 = vmatpush1.msra.mxu0 0.0
    %134 = vmatprep.subr.mxu0 0.0
    %135 = vmatpush1.msra.mxu0 0.0
    %136 = vmatprep.subr.mxu0 0.0
    %137 = vmatpush1.msra.mxu0 0.0
    %138 = vmatprep.subr.mxu0 0.0
    %139 = vmatpush1.msra.mxu0 0.0
    %140 = vmatprep.subr.mxu0 0.0
    %141 = vmatpush1.msra.mxu0 0.0
    %142 = vmatprep.mubr.f32.mxu0 0.0
    %143 = vmatmul.mubr.f32.gmra.mrb[0].mxu0 %v67
    %v144 = vpop.f32.mrb[0].mxu0
    %v145 = vadd.f32 %v48, %v144
    %v146 = vpop.f32.mrb[0].mxu0
    %147 = vmatprep.mubr.f32.mxu0 0.0
    %148 = vmatmul.mubr.f32.gmra.mrb[0].mxu0 %v70
    %v149 = vpop.f32.mrb[0].mxu0
    %v150 = vadd.f32 %v53, %v149
    %v151 = vpop.f32.mrb[0].mxu0
    %152 = vmatprep.mubr.f32.mxu0 0.0
    %153 = vmatmul.mubr.f32.gmra.mrb[0].mxu0 %v73
    %v154 = vpop.f32.mrb[0].mxu0
    %v155 = vadd.f32 %v58, %v154
    %v156 = vpop.f32.mrb[0].mxu0
    %157 = vmatprep.mubr.f32.mxu0 0.0
    %158 = vmatmul.mubr.f32.gmra.mrb[0].mxu0 %v76
    %v159 = vpop.f32.mrb[0].mxu0
    %v160 = vadd.f32 %v63, %v159
    %v161 = vpop.f32.mrb[0].mxu0
    %162 = vdwg.mxu0
    %v163 = vmax.f32 %v145, 0.0
    %v164 = vmax.f32 %v150, 0.0
    %v165 = vmax.f32 %v155, 0.0
    %v166 = vmax.f32 %v160, 0.0
    %v167 = vld [vmem:[%s3] sm:$0xff]
    %v168 = vld [vmem:[%s3 + $0x8] sm:$0xff]
    %v169 = vld [vmem:[%s4] sm:$0xff]
    %v170 = vld [vmem:[%s4 + $0x8] sm:$0xff]
    %172 = vset.pattern.permute.xlu0 0
    %173 = vperm.xlu0 %172, %v169
    %v174 = vpop.permute.xlu0 %173
    %177 = vset.pattern.permute.xlu0 0
    %178 = vperm.xlu0 %177, %v170
    %v179 = vpop.permute.xlu0 %178
    %vm181 = vcmask 261120
    %v183 = vsel %vm181, %v167, 0
    %v186 = vsel %vm181, %v168, 0
    %188 = vmatprep.subr.mxu0 0.0
    %189 = vmatpush1.msra.mxu0 %v163
    %190 = vmatprep.subr.mxu0 0.0
    %191 = vmatpush1.msra.mxu0 %v164
    %192 = vmatprep.subr.mxu0 0.0
    %193 = vmatpush1.msra.mxu0 %v165
    %194 = vmatprep.subr.mxu0 0.0
    %195 = vmatpush1.msra.mxu0 %v166
    %196 = vmatprep.subr.mxu0 0.0
    %197 = vmatpush1.msra.mxu0 0.0
    %198 = vmatprep.subr.mxu0 0.0
    %199 = vmatpush1.msra.mxu0 0.0
    %200 = vmatprep.subr.mxu0 0.0
    %201 = vmatpush1.msra.mxu0 0.0
    %202 = vmatprep.subr.mxu0 0.0
    %203 = vmatpush1.msra.mxu0 0.0
    %204 = vmatprep.subr.mxu0 0.0
    %205 = vmatpush1.msra.mxu0 0.0
    %206 = vmatprep.subr.mxu0 0.0
    %207 = vmatpush1.msra.mxu0 0.0
    %208 = vmatprep.subr.mxu0 0.0
    %209 = vmatpush1.msra.mxu0 0.0
    %210 = vmatprep.subr.mxu0 0.0
    %211 = vmatpush1.msra.mxu0 0.0
    %212 = vmatprep.subr.mxu0 0.0
    %213 = vmatpush1.msra.mxu0 0.0
    %214 = vmatprep.subr.mxu0 0.0
    %215 = vmatpush1.msra.mxu0 0.0
    %216 = vmatprep.subr.mxu0 0.0
    %217 = vmatpush1.msra.mxu0 0.0
    %218 = vmatprep.subr.mxu0 0.0
    %219 = vmatpush1.msra.mxu0 0.0
    %220 = vmatprep.subr.mxu0 0.0
    %221 = vmatpush1.msra.mxu0 0.0
    %222 = vmatprep.subr.mxu0 0.0
    %223 = vmatpush1.msra.mxu0 0.0
    %224 = vmatprep.subr.mxu0 0.0
    %225 = vmatpush1.msra.mxu0 0.0
    %226 = vmatprep.subr.mxu0 0.0
    %227 = vmatpush1.msra.mxu0 0.0
    %228 = vmatprep.subr.mxu0 0.0
    %229 = vmatpush1.msra.mxu0 0.0
    %230 = vmatprep.subr.mxu0 0.0
    %231 = vmatpush1.msra.mxu0 0.0
    %232 = vmatprep.subr.mxu0 0.0
    %233 = vmatpush1.msra.mxu0 0.0
    %234 = vmatprep.subr.mxu0 0.0
    %235 = vmatpush1.msra.mxu0 0.0
    %236 = vmatprep.subr.mxu0 0.0
    %237 = vmatpush1.msra.mxu0 0.0
    %238 = vmatprep.subr.mxu0 0.0
    %239 = vmatpush1.msra.mxu0 0.0
    %240 = vmatprep.subr.mxu0 0.0
    %241 = vmatpush1.msra.mxu0 0.0
    %242 = vmatprep.subr.mxu0 0.0
    %243 = vmatpush1.msra.mxu0 0.0
    %244 = vmatprep.subr.mxu0 0.0
    %245 = vmatpush1.msra.mxu0 0.0
    %246 = vmatprep.subr.mxu0 0.0
    %247 = vmatpush1.msra.mxu0 0.0
    %248 = vmatprep.subr.mxu0 0.0
    %249 = vmatpush1.msra.mxu0 0.0
    %250 = vmatprep.subr.mxu0 0.0
    %251 = vmatpush1.msra.mxu0 0.0
    %252 = vmatprep.mubr.f32.mxu0 0.0
    %253 = vmatmul.mubr.f32.gmra.mrb[0].mxu0 %v183
    %v254 = vpop.f32.mrb[0].mxu0
    %v255 = vadd.f32 %v174, %v254
    %v256 = vpop.f32.mrb[0].mxu0
    %257 = vmatprep.mubr.f32.mxu0 0.0
    %258 = vmatmul.mubr.f32.gmra.mrb[0].mxu0 %v186
    %v259 = vpop.f32.mrb[0].mxu0
    %v260 = vadd.f32 %v179, %v259
    %v261 = vpop.f32.mrb[0].mxu0
    %262 = vdwg.mxu0
    %v263 = vmax.f32 %v255, 0.0
    %v264 = vmax.f32 %v260, 0.0
    %v265 = vld [vmem:[%s5] sm:$0x1]
    %v266 = vld [vmem:[%s6] sm:$0x1]
    %v268 = vsel %vm65, %v266, 0
    %270 = vmatprep.subr.mxu0 0.0
    %271 = vmatpush1.msra.mxu0 %v263
    %272 = vmatprep.subr.mxu0 0.0
    %273 = vmatpush1.msra.mxu0 %v264
    %274 = vmatprep.subr.mxu0 0.0
    %275 = vmatpush1.msra.mxu0 0.0
    %276 = vmatprep.subr.mxu0 0.0
    %277 = vmatpush1.msra.mxu0 0.0
    %278 = vmatprep.subr.mxu0 0.0
    %279 = vmatpush1.msra.mxu0 0.0
    %280 = vmatprep.subr.mxu0 0.0
    %281 = vmatpush1.msra.mxu0 0.0
    %282 = vmatprep.subr.mxu0 0.0
    %283 = vmatpush1.msra.mxu0 0.0
    %284 = vmatprep.subr.mxu0 0.0
    %285 = vmatpush1.msra.mxu0 0.0
    %286 = vmatprep.subr.mxu0 0.0
    %287 = vmatpush1.msra.mxu0 0.0
    %288 = vmatprep.subr.mxu0 0.0
    %289 = vmatpush1.msra.mxu0 0.0
    %290 = vmatprep.subr.mxu0 0.0
    %291 = vmatpush1.msra.mxu0 0.0
    %292 = vmatprep.subr.mxu0 0.0
    %293 = vmatpush1.msra.mxu0 0.0
    %294 = vmatprep.subr.mxu0 0.0
    %295 = vmatpush1.msra.mxu0 0.0
    %296 = vmatprep.subr.mxu0 0.0
    %297 = vmatpush1.msra.mxu0 0.0
    %298 = vmatprep.subr.mxu0 0.0
    %299 = vmatpush1.msra.mxu0 0.0
    %300 = vmatprep.subr.mxu0 0.0
    %301 = vmatpush1.msra.mxu0 0.0
    %302 = vmatprep.subr.mxu0 0.0
    %303 = vmatpush1.msra.mxu0 0.0
    %304 = vmatprep.subr.mxu0 0.0
    %305 = vmatpush1.msra.mxu0 0.0
    %306 = vmatprep.subr.mxu0 0.0
    %307 = vmatpush1.msra.mxu0 0.0
    %308 = vmatprep.subr.mxu0 0.0
    %309 = vmatpush1.msra.mxu0 0.0
    %310 = vmatprep.subr.mxu0 0.0
    %311 = vmatpush1.msra.mxu0 0.0
    %312 = vmatprep.subr.mxu0 0.0
    %313 = vmatpush1.msra.mxu0 0.0
    %314 = vmatprep.subr.mxu0 0.0
    %315 = vmatpush1.msra.mxu0 0.0
    %316 = vmatprep.subr.mxu0 0.0
    %317 = vmatpush1.msra.mxu0 0.0
    %318 = vmatprep.subr.mxu0 0.0
    %319 = vmatpush1.msra.mxu0 0.0
    %320 = vmatprep.subr.mxu0 0.0
    %321 = vmatpush1.msra.mxu0 0.0
    %322 = vmatprep.subr.mxu0 0.0
    %323 = vmatpush1.msra.mxu0 0.0
    %324 = vmatprep.subr.mxu0 0.0
    %325 = vmatpush1.msra.mxu0 0.0
    %326 = vmatprep.subr.mxu0 0.0
    %327 = vmatpush1.msra.mxu0 0.0
    %328 = vmatprep.subr.mxu0 0.0
    %329 = vmatpush1.msra.mxu0 0.0
    %330 = vmatprep.subr.mxu0 0.0
    %331 = vmatpush1.msra.mxu0 0.0
    %332 = vmatprep.subr.mxu0 0.0
    %333 = vmatpush1.msra.mxu0 0.0
    %334 = vmatprep.mubr.f32.mxu0 0.0
    %335 = vmatmul.mubr.f32.gmra.mrb[0].mxu0 %v268
    %v336 = vpop.f32.mrb[0].mxu0
    %v337 = vadd.f32 0.0, %v336
    %v338 = vpop.f32.mrb[0].mxu0
    %339 = vdwg.mxu0
    %vm340 = vcmask 64512
    %v342 = vsel %vm340, %v265, 0
    %344 = vmatprep.subr.mxu0 0.0
    %345 = vmatpush1.msra.mxu0 %v34
    %346 = vmatprep.subr.mxu0 0.0
    %347 = vmatpush1.msra.mxu0 0.0
    %348 = vmatprep.subr.mxu0 0.0
    %349 = vmatpush1.msra.mxu0 0.0
    %350 = vmatprep.subr.mxu0 0.0
    %351 = vmatpush1.msra.mxu0 0.0
    %352 = vmatprep.subr.mxu0 0.0
    %353 = vmatpush1.msra.mxu0 0.0
    %354 = vmatprep.subr.mxu0 0.0
    %355 = vmatpush1.msra.mxu0 0.0
    %356 = vmatprep.subr.mxu0 0.0
    %357 = vmatpush1.msra.mxu0 0.0
    %358 = vmatprep.subr.mxu0 0.0
    %359 = vmatpush1.msra.mxu0 0.0
    %360 = vmatprep.subr.mxu0 0.0
    %361 = vmatpush1.msra.mxu0 0.0
    %362 = vmatprep.subr.mxu0 0.0
    %363 = vmatpush1.msra.mxu0 0.0
    %364 = vmatprep.subr.mxu0 0.0
    %365 = vmatpush1.msra.mxu0 0.0
    %366 = vmatprep.subr.mxu0 0.0
    %367 = vmatpush1.msra.mxu0 0.0
    %368 = vmatprep.subr.mxu0 0.0
    %369 = vmatpush1.msra.mxu0 0.0
    %370 = vmatprep.subr.mxu0 0.0
    %371 = vmatpush1.msra.mxu0 0.0
    %372 = vmatprep.subr.mxu0 0.0
    %373 = vmatpush1.msra.mxu0 0.0
    %374 = vmatprep.subr.mxu0 0.0
    %375 = vmatpush1.msra.mxu0 0.0
    %376 = vmatprep.subr.mxu0 0.0
    %377 = vmatpush1.msra.mxu0 0.0
    %378 = vmatprep.subr.mxu0 0.0
    %379 = vmatpush1.msra.mxu0 0.0
    %380 = vmatprep.subr.mxu0 0.0
    %381 = vmatpush1.msra.mxu0 0.0
    %382 = vmatprep.subr.mxu0 0.0
    %383 = vmatpush1.msra.mxu0 0.0
    %384 = vmatprep.subr.mxu0 0.0
    %385 = vmatpush1.msra.mxu0 0.0
    %386 = vmatprep.subr.mxu0 0.0
    %387 = vmatpush1.msra.mxu0 0.0
    %388 = vmatprep.subr.mxu0 0.0
    %389 = vmatpush1.msra.mxu0 0.0
    %390 = vmatprep.subr.mxu0 0.0
    %391 = vmatpush1.msra.mxu0 0.0
    %392 = vmatprep.subr.mxu0 0.0
    %393 = vmatpush1.msra.mxu0 0.0
    %394 = vmatprep.subr.mxu0 0.0
    %395 = vmatpush1.msra.mxu0 0.0
    %396 = vmatprep.subr.mxu0 0.0
    %397 = vmatpush1.msra.mxu0 0.0
    %398 = vmatprep.subr.mxu0 0.0
    %399 = vmatpush1.msra.mxu0 0.0
    %400 = vmatprep.subr.mxu0 0.0
    %401 = vmatpush1.msra.mxu0 0.0
    %402 = vmatprep.subr.mxu0 0.0
    %403 = vmatpush1.msra.mxu0 0.0
    %404 = vmatprep.subr.mxu0 0.0
    %405 = vmatpush1.msra.mxu0 0.0
    %406 = vmatprep.subr.mxu0 0.0
    %407 = vmatpush1.msra.mxu0 0.0
    %408 = vmatprep.mubr.f32.mxu0 0.0
    %409 = vmatmul.mubr.f32.gmra.mrb[0].mxu0 %v342
    %v410 = vpop.f32.mrb[0].mxu0
    %v411 = vadd.f32 %v337, %v410
    %v412 = vpop.f32.mrb[0].mxu0
    %413 = vdwg.mxu0
    %v414 = vld [vmem:[#allocation2] sm:$0x1]
    %416 = vset.pattern.permute.xlu0 0
    %417 = vperm.xlu0 %416, %v414
    %v418 = vpop.permute.xlu0 %417
    %v420 = vlaneseq
    %v421 = vshrl.u32 %v420, 7
    %v422 = vsub.s32 0, %v421
    %v423 = vrot.slane %v418, %v422
    %v424 = vadd.f32 %v411, %v423
    %425 = vst [vmem:[#allocation3] sm:$0x1] %v424
    // Predicated region
    $region34: #{tpu_custom_call.1} parent=1 // pred_check
      _
    $region35: #{tpu_custom_call.1} parent=1 // pred_check_branch
      %427 = sbr.rel (0) target = $region37
    $region36: #{tpu_custom_call.1} parent=1 // pred_region
      %s429 = ssub.s32 16, 16
      %430 = vsyncadd [#allocation4], %s429
      %s432 = sshll.u32 [#allocation3], 4
      %s433 = int_to_ptr.vmem [resolvable:$true] %s432
      %435 = dma.vmem_to_hbm [thread:$0]  %s433, 16, %s8, [#allocation4]
    $region37: #{tpu_custom_call.1} parent=1 // pred_fallthru
      _
    // Predicated region
    $region38: #{tpu_custom_call.1} parent=1 // pred_check
      _
    $region39: #{tpu_custom_call.1} parent=1 // pred_check_branch
      %437 = sbr.rel (0) target = $region41
    $region40: #{tpu_custom_call.1} parent=1 // pred_region
      %438 = dma.done [#allocation4], 16
    $region41: #{tpu_custom_call.1} parent=1 // pred_fallthru
      _
    %439 = vsyncpa [#allocation4], 1

</llo_original>
